<compile_context>
chip_gen: v6e
topology: v6e:2x2x1
jax: 0.10.0
libtpu: 0.0.40
codegen_flags: <defaults>
</compile_context>

<pallas_src>
import functools
import numpy as np
import jax
import jax.numpy as jnp
from jax.experimental import pallas as pl
from jax.experimental.pallas import tpu as pltpu


def _dino_loss_kernel(student_ref, teacher_ref, center_ref,
                      loss_ref, csum_ref,
                      s_sum_ref, lsm0_ref, lsm1_ref,
                      *, ncrops, inv_s_temp, inv_t_temp):
    i = pl.program_id(1)   # batch-tile step within this core
    v = pl.program_id(2)   # student crop index

    # Init the resident per-core output accumulators once.
    @pl.when((i == 0) & (v == 0))
    def _():
        loss_ref[...] = jnp.zeros_like(loss_ref)
        csum_ref[...] = jnp.zeros_like(csum_ref)

    # log_softmax of this student crop tile: a single (TB, D) pass per step.
    s = student_ref[0].astype(jnp.float32) * inv_s_temp            # (TB, D)
    s = s - jnp.max(s, axis=-1, keepdims=True)
    lsm = s - jnp.log(jnp.sum(jnp.exp(s), axis=-1, keepdims=True))  # (TB, D)

    # Accumulate S = sum_v log_softmax(student_v); keep crops 0/1 separately
    # because each is excluded from its matching teacher crop.
    @pl.when(v == 0)
    def _():
        s_sum_ref[...] = lsm
        lsm0_ref[...] = lsm

    @pl.when(v == 1)
    def _():
        lsm1_ref[...] = lsm

    @pl.when(v > 0)
    def _():
        s_sum_ref[...] = s_sum_ref[...] + lsm

    # Last crop: fold in the teacher (still resident in VMEM, fetched once per
    # batch tile) and accumulate loss + EMA-center sums.
    @pl.when(v == ncrops - 1)
    def _():
        d = center_ref.shape[-1]
        teacher = teacher_ref[...].astype(jnp.float32)                   # (2, TB, D)
        center = center_ref[...].astype(jnp.float32).reshape(1, 1, d)    # (1, 1, D)

        # Unnormalised softmax numerator + per-row sums; normalisation is a
        # single per-row divide of the reduced dot below.
        t = (teacher - center) * inv_t_temp
        t = t - jnp.max(t, axis=-1, keepdims=True)
        t_exp = jnp.exp(t)                                               # (2, TB, D)
        t_rowsum = jnp.sum(t_exp, axis=-1, keepdims=True)                # (2, TB, 1)

        s_total = s_sum_ref[...]                                         # (TB, D)
        # sum_{v != iq} <q_iq, log_sm_v> == <t_exp_iq, S - lsm_iq> / rowsum_iq
        dot0 = jnp.sum(t_exp[0] * (s_total - lsm0_ref[...]),
                       axis=-1, keepdims=True)                           # (TB, 1)
        dot1 = jnp.sum(t_exp[1] * (s_total - lsm1_ref[...]),
                       axis=-1, keepdims=True)                           # (TB, 1)
        row_tot = dot0 / t_rowsum[0] + dot1 / t_rowsum[1]                # (TB, 1)
        loss_ref[...] += -jnp.sum(row_tot)   # final /(B*n_terms) in the wrapper

        # EMA-center contribution: teacher tile summed over both crops & batch.
        tsum = jnp.sum(teacher, axis=1, keepdims=True)                   # (2, 1, D)
        csum_ref[...] += jnp.sum(tsum, axis=0, keepdims=True)            # (1, 1, D)


def _tpu_core_and_vmem_info():
    """(tensorcores_per_chip, VMEM capacity bytes) with conservative fallbacks."""
    cores, vmem = 1, 64 << 20   # fallback sized for the smallest VMEM (v7x)
    try:
        info = pltpu.get_tpu_info()
    except Exception:
        return cores, vmem
    for name in ("vmem_capacity_bytes", "vmem_bytes", "vmem_size_bytes"):
        val = getattr(info, name, None)
        if isinstance(val, (int, np.integer)) and val > 0:
            vmem = int(val)
            break
    for name in ("num_cores", "num_tensorcores", "tensorcore_count",
                 "cores_per_chip", "num_available_cores"):
        val = getattr(info, name, None)
        if isinstance(val, (int, np.integer)) and val > 0:
            cores = int(val)
            break
    return cores, vmem


def _per_row_vmem_bytes(D, itemsize):
    """Working-set bytes per batch row of a tile:
       - pipelined inputs: student 2 bufs x 1 crop + teacher 2 bufs x 2 crops
       - persistent f32 scratch: S, lsm0, lsm1  (3 rows)
       - f32 intermediates (teacher f32, t_exp, exp/sub temporaries) ~ 8 rows
    """
    return D * (6 * itemsize + (3 + 8) * 4)


def _pick_block_batch(B, per_row_bytes, budget_bytes, sublane):
    """Largest batch tile (multiple of `sublane`, dividing B) whose whole
    working set fits in budget_bytes; clamps to the smallest legal tile
    (never silently falls back to the full batch) when nothing fits."""
    tb_cap = max(1, budget_bytes // per_row_bytes)
    cands = [t for t in range(sublane, B + 1, sublane) if B % t == 0]
    if B not in cands:
        cands.append(B)          # full batch is always a legal block shape
    fitting = [t for t in cands if t <= tb_cap]
    if fitting:
        return max(fitting)
    return min(cands)


def dino_loss(student_output, teacher_output, center, epoch, *,
              ncrops, teacher_temp_schedule, student_temp=0.1,
              center_momentum=0.9, block_batch=None, num_cores=None,
              input_dtype=None, budget_bytes=None, vmem_limit_bytes=None):
    """Returns (total_loss, new_center) matching DINOLoss.forward (plus the
    center buffer that PyTorch updates in place).  `epoch` must be a static
    Python int (the temperature schedule is indexed at trace time)."""
    two_b, D = teacher_output.shape
    B = two_b // 2
    assert student_output.shape == (ncrops * B, D)
    assert ncrops >= 2

    t_temp = float(teacher_temp_schedule[int(epoch)])
    inv_s_temp = float(1.0 / student_temp)
    inv_t_temp = float(1.0 / t_temp)

    if input_dtype is not None:
        student_output = student_output.astype(input_dtype)
        teacher_output = teacher_output.astype(input_dtype)

    student_r = student_output.reshape(ncrops, B, D)
    teacher_r = teacher_output.reshape(2, B, D)

    itemsize = jnp.dtype(student_r.dtype).itemsize
    sublane = {4: 8, 2: 16, 1: 32}.get(itemsize, 8)

    detected_cores, vmem_cap = _tpu_core_and_vmem_info()

    # Generation-aware budget for the full tile working set (inputs + f32
    # scratch + intermediates), not just the double-buffered inputs.
    if budget_bytes is None:
        budget_bytes = min(vmem_cap // 2, 48 << 20)

    per_row_bytes = _per_row_vmem_bytes(D, itemsize)
    if block_batch is None:
        block_batch = _pick_block_batch(B, per_row_bytes, budget_bytes, sublane)
    assert B % block_batch == 0
    assert block_batch == B or block_batch % sublane == 0

    num_tiles = B // block_batch
    if num_cores is None:
        num_cores = detected_cores if (detected_cores >= 1 and
                                       num_tiles % max(detected_cores, 1) == 0) else 1
        num_cores = max(int(num_cores), 1)
    assert num_tiles % num_cores == 0
    steps = num_tiles // num_cores

    # Explicit scoped-VMEM limit sized to the real working set (capped below
    # the physical capacity so the compiler never over-commits).
    est_bytes = per_row_bytes * block_batch + 4 * D * (2 * itemsize + 8) + (2 << 20)
    if vmem_limit_bytes is None:
        vmem_limit_bytes = int(min(max(2 * est_bytes, 64 << 20),
                                   (9 * vmem_cap) // 10))

    kernel = functools.partial(_dino_loss_kernel, ncrops=ncrops,
                               inv_s_temp=inv_s_temp, inv_t_temp=inv_t_temp)

    loss_parts, csum_parts = pl.pallas_call(
        kernel,
        out_shape=(jax.ShapeDtypeStruct((num_cores, 1, 1), jnp.float32),
                   jax.ShapeDtypeStruct((num_cores, 1, D), jnp.float32)),
        grid_spec=pltpu.PrefetchScalarGridSpec(
            num_scalar_prefetch=0,
            grid=(num_cores, steps, ncrops),
            in_specs=[
                # One student crop per step.
                pl.BlockSpec((1, block_batch, D),
                             lambda c, i, v: (v, c * steps + i, 0)),
                # Teacher: constant along the crop axis -> fetched once per
                # batch tile and stays resident in VMEM.
                pl.BlockSpec((2, block_batch, D),
                             lambda c, i, v: (0, c * steps + i, 0)),
                # Center: constant -> fetched once.
                pl.BlockSpec((1, D), lambda c, i, v: (0, 0)),
            ],
            out_specs=(
                pl.BlockSpec((1, 1, 1), lambda c, i, v: (c, 0, 0)),   # loss partials
                pl.BlockSpec((1, 1, D), lambda c, i, v: (c, 0, 0)),   # teacher sums
            ),
            scratch_shapes=[
                pltpu.VMEM((block_batch, D), jnp.float32),   # S = sum_v log_softmax
                pltpu.VMEM((block_batch, D), jnp.float32),   # log_softmax crop 0
                pltpu.VMEM((block_batch, D), jnp.float32),   # log_softmax crop 1
            ]),
        compiler_params=pltpu.CompilerParams(
            dimension_semantics=("parallel", "arbitrary", "arbitrary"),
            vmem_limit_bytes=int(vmem_limit_bytes)),
    )(student_r, teacher_r, center)

    n_terms = 2 * (ncrops - 1)
    total_loss = jnp.sum(loss_parts) / (B * n_terms)

    # TODO(synk): torch.distributed all_reduce / get_world_size for the center
    # update is not modeled here (world_size == 1); add a lax.psum of
    # batch_center when running under shard_map / pmap.
    batch_center = jnp.sum(csum_parts, axis=0).reshape(1, D) / (2 * B)
    new_center = (center.astype(jnp.float32) * center_momentum
                  + batch_center * (1.0 - center_momentum))
    return total_loss, new_center


def _reference(student_output, teacher_output, center, epoch, *,
               ncrops, teacher_temp_schedule, student_temp=0.1,
               center_momentum=0.9):
    """Pure-JAX reference mirroring the PyTorch forward."""
    temp = float(teacher_temp_schedule[int(epoch)])
    student_out = student_output.astype(jnp.float32) / student_temp
    student_chunks = jnp.split(student_out, ncrops, axis=0)
    teacher_out = jax.nn.softmax(
        (teacher_output.astype(jnp.float32) - center) / temp, axis=-1)
    teacher_chunks = jnp.split(teacher_out, 2, axis=0)
    total, n = 0.0, 0
    for iq, q in enumerate(teacher_chunks):
        for v in range(ncrops):
            if v == iq:
                continue
            loss = jnp.sum(-q * jax.nn.log_softmax(student_chunks[v], axis=-1),
                           axis=-1)
            total = total + loss.mean()
            n += 1
    total = total / n
    batch_center = (jnp.sum(teacher_output.astype(jnp.float32), axis=0,
                            keepdims=True) / teacher_output.shape[0])
    new_center = center * center_momentum + batch_center * (1 - center_momentum)
    return total, new_center


if __name__ == "__main__":
    # Module hyper-parameters (DINOLoss.__init__)
    out_dim = 128
    ncrops = 4
    warmup_teacher_temp = 0.04
    teacher_temp = 0.07
    warmup_teacher_temp_epochs = 2
    nepochs = 5
    student_temp = 0.1
    center_momentum = 0.9

    teacher_temp_schedule = np.concatenate((
        np.linspace(warmup_teacher_temp, teacher_temp, warmup_teacher_temp_epochs),
        np.ones(nepochs - warmup_teacher_temp_epochs) * teacher_temp,
    ))

    B = 32          # per-crop batch size (small demo shape)
    epoch = 1

    key = jax.random.PRNGKey(0)
    k_s, k_t, k_c = jax.random.split(key, 3)
    student_output = jax.random.normal(k_s, (ncrops * B, out_dim), dtype=jnp.float32)
    teacher_output = jax.random.normal(k_t, (2 * B, out_dim), dtype=jnp.float32)
    center = 0.1 * jax.random.normal(k_c, (1, out_dim), dtype=jnp.float32)

    common = dict(ncrops=ncrops, teacher_temp_schedule=teacher_temp_schedule,
                  student_temp=student_temp, center_momentum=center_momentum)

    ref_loss, ref_center = _reference(student_output, teacher_output, center,
                                      epoch, **common)

    # 1) f32 inputs, forced small batch tiles: exercises the crop-axis scratch
    #    accumulation, batch-tile accumulation and (when >1 core is detected)
    #    the TensorCore-parallel split.
    loss, new_center = dino_loss(student_output, teacher_output, center, epoch,
                                 block_batch=8, **common)
    jax.block_until_ready((loss, new_center))
    assert jnp.allclose(loss, ref_loss, rtol=1e-5, atol=1e-5), (loss, ref_loss)
    assert jnp.allclose(new_center, ref_center, rtol=1e-5, atol=1e-5)

    # 2) auto tile size + VMEM budget / limit derived from the chip info.
    loss2, new_center2 = dino_loss(student_output, teacher_output, center,
                                   epoch, **common)
    jax.block_until_ready((loss2, new_center2))
    assert jnp.allclose(loss2, ref_loss, rtol=1e-5, atol=1e-5), (loss2, ref_loss)
    assert jnp.allclose(new_center2, ref_center, rtol=1e-5, atol=1e-5)

    # 3) bf16 input path (halves HBM traffic, kernel computes in f32);
    #    bf16 tiles must be multiples of 16 rows.
    s_bf16 = student_output.astype(jnp.bfloat16)
    t_bf16 = teacher_output.astype(jnp.bfloat16)
    loss3, new_center3 = dino_loss(s_bf16, t_bf16, center, epoch,
                                   block_batch=16, **common)
    jax.block_until_ready((loss3, new_center3))
    ref_loss3, ref_center3 = _reference(s_bf16, t_bf16, center, epoch, **common)
    assert jnp.allclose(loss3, ref_loss3, rtol=1e-4, atol=1e-4), (loss3, ref_loss3)
    assert jnp.allclose(new_center3, ref_center3, rtol=1e-4, atol=1e-4)

    print("KERNEL_OK")
</pallas_src>

<mosaic_0001>
module attributes {stable_mosaic.version = 11 : i64} {
  func.func @_dino_loss_kernel(%arg0: i32, %arg1: i32, %arg2: i32, %arg3: memref<1x8x128xf32, #tpu.memory_space<vmem>>, %arg4: memref<2x8x128xf32, #tpu.memory_space<vmem>>, %arg5: memref<1x128xf32, #tpu.memory_space<vmem>>, %arg6: memref<1x1x1xf32, #tpu.memory_space<vmem>>, %arg7: memref<1x1x128xf32, #tpu.memory_space<vmem>>, %arg8: memref<8x128xf32, #tpu.memory_space<vmem>>, %arg9: memref<8x128xf32, #tpu.memory_space<vmem>>, %arg10: memref<8x128xf32, #tpu.memory_space<vmem>>) attributes {dimension_semantics = [#tpu.dimension_semantics<parallel>, #tpu.dimension_semantics<arbitrary>, #tpu.dimension_semantics<arbitrary>], iteration_bounds = array<i64: 1, 4, 4>, scalar_prefetch = 0 : i64, scratch_operands = 3 : i64, tpu.core_type = #tpu.core_type<tc>, window_params = [{transform_indices = @transform_0, window_bounds = array<i64: 1, 8, 128>}, {transform_indices = @transform_1, window_bounds = array<i64: 2, 8, 128>}, {pipeline_mode = #tpu.pipeline_mode<synchronous>, transform_indices = @transform_2, window_bounds = array<i64: 1, 128>}, {transform_indices = @transform_3, window_bounds = array<i64: 1, 1, 1>}, {transform_indices = @transform_4, window_bounds = array<i64: 1, 1, 128>}]} {
    %c0_i32 = arith.constant 0 : i32
    %0 = arith.cmpi eq, %arg1, %c0_i32 : i32
    %c0_i32_0 = arith.constant 0 : i32
    %1 = arith.cmpi eq, %arg2, %c0_i32_0 : i32
    %2 = arith.andi %0, %1 : i1
    %3 = arith.extui %2 : i1 to i32
    %c0_i32_1 = arith.constant 0 : i32
    %4 = arith.cmpi ne, %3, %c0_i32_1 : i32
    scf.if %4 {
      %cst_12 = arith.constant 0.000000e+00 : f32
      %31 = vector.broadcast %cst_12 : f32 to vector<1x1x1xf32>
      %c0_13 = arith.constant 0 : index
      %c0_14 = arith.constant 0 : index
      %c0_15 = arith.constant 0 : index
      %32 = vector.load %arg6[%c0_13, %c0_14, %c0_15] : memref<1x1x1xf32, #tpu.memory_space<vmem>>, vector<1x1x1xf32>
      tpu.vector_store %arg6[%c0_13, %c0_14, %c0_15], %31 {strides = array<i32>} : memref<1x1x1xf32, #tpu.memory_space<vmem>>, vector<1x1x1xf32>,
      %cst_16 = arith.constant 0.000000e+00 : f32
      %33 = vector.broadcast %cst_16 : f32 to vector<1x1x128xf32>
      %c0_17 = arith.constant 0 : index
      %c0_18 = arith.constant 0 : index
      %c0_19 = arith.constant 0 : index
      %34 = vector.load %arg7[%c0_17, %c0_18, %c0_19] : memref<1x1x128xf32, #tpu.memory_space<vmem>>, vector<1x1x128xf32>
      tpu.vector_store %arg7[%c0_17, %c0_18, %c0_19], %33 {strides = array<i32>} : memref<1x1x128xf32, #tpu.memory_space<vmem>>, vector<1x1x128xf32>,
    } else {
    }
    %c0 = arith.constant 0 : index
    %c0_2 = arith.constant 0 : index
    %c0_3 = arith.constant 0 : index
    %5 = vector.load %arg3[%c0, %c0_2, %c0_3] : memref<1x8x128xf32, #tpu.memory_space<vmem>>, vector<1x8x128xf32>
    %6 = vector.shape_cast %5 : vector<1x8x128xf32> to vector<8x128xf32>
    %cst = arith.constant 1.000000e+01 : f32
    %7 = vector.broadcast %cst : f32 to vector<8x128xf32>
    %8 = arith.mulf %6, %7 : vector<8x128xf32>
    %cst_4 = arith.constant dense<0xFF800000> : vector<8xf32>
    %9 = vector.multi_reduction <maximumf>, %8, %cst_4 [1] : vector<8x128xf32> to vector<8xf32>
    %10 = vector.shape_cast %9 : vector<8xf32> to vector<8x1xf32>
    %11 = vector.broadcast %10 : vector<8x1xf32> to vector<8x128xf32>
    %12 = arith.subf %8, %11 : vector<8x128xf32>
    %13 = math.exp %12 : vector<8x128xf32>
    %cst_5 = arith.constant dense<0.000000e+00> : vector<8xf32>
    %14 = vector.multi_reduction <add>, %13, %cst_5 [1] : vector<8x128xf32> to vector<8xf32>
    %15 = vector.shape_cast %14 : vector<8xf32> to vector<8x1xf32>
    %16 = math.log %15 : vector<8x1xf32>
    %17 = vector.broadcast %16 : vector<8x1xf32> to vector<8x128xf32>
    %18 = arith.subf %12, %17 : vector<8x128xf32>
    %c0_i32_6 = arith.constant 0 : i32
    %19 = arith.cmpi eq, %arg2, %c0_i32_6 : i32
    %20 = arith.extui %19 : i1 to i32
    %c0_i32_7 = arith.constant 0 : i32
    %21 = arith.cmpi ne, %20, %c0_i32_7 : i32
    scf.if %21 {
      %c0_12 = arith.constant 0 : index
      %c0_13 = arith.constant 0 : index
      %31 = vector.load %arg8[%c0_12, %c0_13] : memref<8x128xf32, #tpu.memory_space<vmem>>, vector<8x128xf32>
      tpu.vector_store %arg8[%c0_12, %c0_13], %18 {strides = array<i32>} : memref<8x128xf32, #tpu.memory_space<vmem>>, vector<8x128xf32>,
      %c0_14 = arith.constant 0 : index
      %c0_15 = arith.constant 0 : index
      %32 = vector.load %arg9[%c0_14, %c0_15] : memref<8x128xf32, #tpu.memory_space<vmem>>, vector<8x128xf32>
      tpu.vector_store %arg9[%c0_14, %c0_15], %18 {strides = array<i32>} : memref<8x128xf32, #tpu.memory_space<vmem>>, vector<8x128xf32>,
    } else {
    }
    %c1_i32 = arith.constant 1 : i32
    %22 = arith.cmpi eq, %arg2, %c1_i32 : i32
    %23 = arith.extui %22 : i1 to i32
    %c0_i32_8 = arith.constant 0 : i32
    %24 = arith.cmpi ne, %23, %c0_i32_8 : i32
    scf.if %24 {
      %c0_12 = arith.constant 0 : index
      %c0_13 = arith.constant 0 : index
      %31 = vector.load %arg10[%c0_12, %c0_13] : memref<8x128xf32, #tpu.memory_space<vmem>>, vector<8x128xf32>
      tpu.vector_store %arg10[%c0_12, %c0_13], %18 {strides = array<i32>} : memref<8x128xf32, #tpu.memory_space<vmem>>, vector<8x128xf32>,
    } else {
    }
    %c0_i32_9 = arith.constant 0 : i32
    %25 = arith.cmpi sgt, %arg2, %c0_i32_9 : i32
    %26 = arith.extui %25 : i1 to i32
    %c0_i32_10 = arith.constant 0 : i32
    %27 = arith.cmpi ne, %26, %c0_i32_10 : i32
    scf.if %27 {
      %c0_12 = arith.constant 0 : index
      %c0_13 = arith.constant 0 : index
      %31 = vector.load %arg8[%c0_12, %c0_13] : memref<8x128xf32, #tpu.memory_space<vmem>>, vector<8x128xf32>
      %32 = arith.addf %31, %18 : vector<8x128xf32>
      %c0_14 = arith.constant 0 : index
      %c0_15 = arith.constant 0 : index
      %33 = vector.load %arg8[%c0_14, %c0_15] : memref<8x128xf32, #tpu.memory_space<vmem>>, vector<8x128xf32>
      tpu.vector_store %arg8[%c0_14, %c0_15], %32 {strides = array<i32>} : memref<8x128xf32, #tpu.memory_space<vmem>>, vector<8x128xf32>,
    } else {
    }
    %c3_i32 = arith.constant 3 : i32
    %28 = arith.cmpi eq, %arg2, %c3_i32 : i32
    %29 = arith.extui %28 : i1 to i32
    %c0_i32_11 = arith.constant 0 : i32
    %30 = arith.cmpi ne, %29, %c0_i32_11 : i32
    scf.if %30 {
      %c0_12 = arith.constant 0 : index
      %c0_13 = arith.constant 0 : index
      %c0_14 = arith.constant 0 : index
      %31 = vector.load %arg4[%c0_12, %c0_13, %c0_14] : memref<2x8x128xf32, #tpu.memory_space<vmem>>, vector<2x8x128xf32>
      %c0_15 = arith.constant 0 : index
      %c0_16 = arith.constant 0 : index
      %32 = vector.load %arg5[%c0_15, %c0_16] : memref<1x128xf32, #tpu.memory_space<vmem>>, vector<1x128xf32>
      %33 = vector.shape_cast %32 : vector<1x128xf32> to vector<1x1x128xf32>
      %34 = vector.broadcast %33 : vector<1x1x128xf32> to vector<2x8x128xf32>
      %35 = arith.subf %31, %34 : vector<2x8x128xf32>
      %cst_17 = arith.constant 14.2857141 : f32
      %36 = vector.broadcast %cst_17 : f32 to vector<2x8x128xf32>
      %37 = arith.mulf %35, %36 : vector<2x8x128xf32>
      %cst_18 = arith.constant dense<0xFF800000> : vector<2x8xf32>
      %38 = vector.multi_reduction <maximumf>, %37, %cst_18 [2] : vector<2x8x128xf32> to vector<2x8xf32>
      %39 = vector.shape_cast %38 : vector<2x8xf32> to vector<2x8x1xf32>
      %40 = vector.broadcast %39 : vector<2x8x1xf32> to vector<2x8x128xf32>
      %41 = arith.subf %37, %40 : vector<2x8x128xf32>
      %42 = math.exp %41 : vector<2x8x128xf32>
      %cst_19 = arith.constant dense<0.000000e+00> : vector<2x8xf32>
      %43 = vector.multi_reduction <add>, %42, %cst_19 [2] : vector<2x8x128xf32> to vector<2x8xf32>
      %44 = vector.shape_cast %43 : vector<2x8xf32> to vector<2x8x1xf32>
      %c0_20 = arith.constant 0 : index
      %c0_21 = arith.constant 0 : index
      %45 = vector.load %arg8[%c0_20, %c0_21] : memref<8x128xf32, #tpu.memory_space<vmem>>, vector<8x128xf32>
      %46 = vector.extract_strided_slice %42 {offsets = [0, 0, 0], sizes = [1, 8, 128], strides = [1, 1, 1]} : vector<2x8x128xf32> to vector<1x8x128xf32>
      %47 = vector.shape_cast %46 : vector<1x8x128xf32> to vector<8x128xf32>
      %c0_22 = arith.constant 0 : index
      %c0_23 = arith.constant 0 : index
      %48 = vector.load %arg9[%c0_22, %c0_23] : memref<8x128xf32, #tpu.memory_space<vmem>>, vector<8x128xf32>
      %49 = arith.subf %45, %48 : vector<8x128xf32>
      %50 = arith.mulf %47, %49 : vector<8x128xf32>
      %cst_24 = arith.constant dense<0.000000e+00> : vector<8xf32>
      %51 = vector.multi_reduction <add>, %50, %cst_24 [1] : vector<8x128xf32> to vector<8xf32>
      %52 = vector.shape_cast %51 : vector<8xf32> to vector<8x1xf32>
      %53 = vector.extract_strided_slice %42 {offsets = [1, 0, 0], sizes = [1, 8, 128], strides = [1, 1, 1]} : vector<2x8x128xf32> to vector<1x8x128xf32>
      %54 = vector.shape_cast %53 : vector<1x8x128xf32> to vector<8x128xf32>
      %c0_25 = arith.constant 0 : index
      %c0_26 = arith.constant 0 : index
      %55 = vector.load %arg10[%c0_25, %c0_26] : memref<8x128xf32, #tpu.memory_space<vmem>>, vector<8x128xf32>
      %56 = arith.subf %45, %55 : vector<8x128xf32>
      %57 = arith.mulf %54, %56 : vector<8x128xf32>
      %cst_27 = arith.constant dense<0.000000e+00> : vector<8xf32>
      %58 = vector.multi_reduction <add>, %57, %cst_27 [1] : vector<8x128xf32> to vector<8xf32>
      %59 = vector.shape_cast %58 : vector<8xf32> to vector<8x1xf32>
      %60 = vector.extract_strided_slice %44 {offsets = [0, 0, 0], sizes = [1, 8, 1], strides = [1, 1, 1]} : vector<2x8x1xf32> to vector<1x8x1xf32>
      %61 = vector.shape_cast %60 : vector<1x8x1xf32> to vector<8x1xf32>
      %62 = arith.divf %52, %61 : vector<8x1xf32>
      %63 = vector.extract_strided_slice %44 {offsets = [1, 0, 0], sizes = [1, 8, 1], strides = [1, 1, 1]} : vector<2x8x1xf32> to vector<1x8x1xf32>
      %64 = vector.shape_cast %63 : vector<1x8x1xf32> to vector<8x1xf32>
      %65 = arith.divf %59, %64 : vector<8x1xf32>
      %66 = arith.addf %62, %65 : vector<8x1xf32>
      %c0_28 = arith.constant 0 : index
      %c0_29 = arith.constant 0 : index
      %c0_30 = arith.constant 0 : index
      %67 = vector.load %arg6[%c0_28, %c0_29, %c0_30] : memref<1x1x1xf32, #tpu.memory_space<vmem>>, vector<1x1x1xf32>
      %68 = vector.shape_cast %66 : vector<8x1xf32> to vector<1x8x1xf32>
      %cst_31 = arith.constant dense<0.000000e+00> : vector<1xf32>
      %69 = vector.multi_reduction <add>, %68, %cst_31 [1, 2] : vector<1x8x1xf32> to vector<1xf32>
      %70 = vector.shape_cast %69 : vector<1xf32> to vector<1x1x1xf32>
      %71 = vector.extract %70[0, 0, 0] : f32 from vector<1x1x1xf32>
      %cst_32 = arith.constant 0.000000e+00 : f32
      %72 = arith.subf %cst_32, %71 : f32
      %73 = vector.broadcast %72 : f32 to vector<1x1x1xf32>
      %74 = arith.addf %67, %73 : vector<1x1x1xf32>
      %c0_33 = arith.constant 0 : index
      %c0_34 = arith.constant 0 : index
      %c0_35 = arith.constant 0 : index
      %75 = vector.load %arg6[%c0_33, %c0_34, %c0_35] : memref<1x1x1xf32, #tpu.memory_space<vmem>>, vector<1x1x1xf32>
      tpu.vector_store %arg6[%c0_33, %c0_34, %c0_35], %74 {strides = array<i32>} : memref<1x1x1xf32, #tpu.memory_space<vmem>>, vector<1x1x1xf32>,
      %cst_36 = arith.constant dense<0.000000e+00> : vector<2x128xf32>
      %76 = vector.multi_reduction <add>, %31, %cst_36 [1] : vector<2x8x128xf32> to vector<2x128xf32>
      %77 = vector.shape_cast %76 : vector<2x128xf32> to vector<2x1x128xf32>
      %c0_37 = arith.constant 0 : index
      %c0_38 = arith.constant 0 : index
      %c0_39 = arith.constant 0 : index
      %78 = vector.load %arg7[%c0_37, %c0_38, %c0_39] : memref<1x1x128xf32, #tpu.memory_space<vmem>>, vector<1x1x128xf32>
      %cst_40 = arith.constant dense<0.000000e+00> : vector<1x128xf32>
      %79 = vector.multi_reduction <add>, %77, %cst_40 [0] : vector<2x1x128xf32> to vector<1x128xf32>
      %80 = vector.shape_cast %79 : vector<1x128xf32> to vector<1x1x128xf32>
      %81 = arith.addf %78, %80 : vector<1x1x128xf32>
      %c0_41 = arith.constant 0 : index
      %c0_42 = arith.constant 0 : index
      %c0_43 = arith.constant 0 : index
      %82 = vector.load %arg7[%c0_41, %c0_42, %c0_43] : memref<1x1x128xf32, #tpu.memory_space<vmem>>, vector<1x1x128xf32>
      tpu.vector_store %arg7[%c0_41, %c0_42, %c0_43], %81 {strides = array<i32>} : memref<1x1x128xf32, #tpu.memory_space<vmem>>, vector<1x1x128xf32>,
    } else {
    }
    return
  }
  func.func @transform_0(%arg0: i32, %arg1: i32, %arg2: i32) -> (i32, i32, i32) {
    %c4_i32 = arith.constant 4 : i32
    %0 = arith.muli %arg0, %c4_i32 : i32
    %1 = arith.addi %0, %arg1 : i32
    %c0_i32 = arith.constant 0 : i32
    %c0_i32_0 = arith.constant 0 : i32
    return %arg2, %1, %c0_i32 : i32, i32, i32
  }
  func.func @transform_1(%arg0: i32, %arg1: i32, %arg2: i32) -> (i32, i32, i32) {
    %c4_i32 = arith.constant 4 : i32
    %0 = arith.muli %arg0, %c4_i32 : i32
    %1 = arith.addi %0, %arg1 : i32
    %c0_i32 = arith.constant 0 : i32
    %c0_i32_0 = arith.constant 0 : i32
    %c0_i32_1 = arith.constant 0 : i32
    return %c0_i32, %1, %c0_i32_0 : i32, i32, i32
  }
  func.func @transform_2(%arg0: i32, %arg1: i32, %arg2: i32) -> (i32, i32) {
    %c0_i32 = arith.constant 0 : i32
    %c0_i32_0 = arith.constant 0 : i32
    %c0_i32_1 = arith.constant 0 : i32
    return %c0_i32, %c0_i32_0 : i32, i32
  }
  func.func @transform_3(%arg0: i32, %arg1: i32, %arg2: i32) -> (i32, i32, i32) {
    %c0_i32 = arith.constant 0 : i32
    %c0_i32_0 = arith.constant 0 : i32
    %c0_i32_1 = arith.constant 0 : i32
    return %arg0, %c0_i32, %c0_i32_0 : i32, i32, i32
  }
  func.func @transform_4(%arg0: i32, %arg1: i32, %arg2: i32) -> (i32, i32, i32) {
    %c0_i32 = arith.constant 0 : i32
    %c0_i32_0 = arith.constant 0 : i32
    %c0_i32_1 = arith.constant 0 : i32
    return %arg0, %c0_i32, %c0_i32_0 : i32, i32, i32
  }
}

</mosaic_0001>

<llo_original>
// kernel: tpu_custom_call.1
$region0: #{tpu_custom_call.1}
  #allocation0 [shape = 'u32[]', space=smem, size = 0x4, offset = 0x4, fixed_abs, tag = 'smem constant byte address 0x4 - core index']
  #allocation1 [shape = 'u32[144,128]{1,0:T(1,128)}', space=vmem, size = 0x12000, scoped, tag = 'internal scratch']
  #allocation2 [shape = 'f32[8,128]{1,0:T(8,128)}', space=vmem, size = 0x1000, scoped, tag = 'scratch operand']
  #allocation3 [shape = 'f32[8,128]{1,0:T(8,128)}', space=vmem, size = 0x1000, scoped, tag = 'scratch operand']
  #allocation4 [shape = 'f32[8,128]{1,0:T(8,128)}', space=vmem, size = 0x1000, scoped, tag = 'scratch operand']
  %s0 = inlined_call_operand.hbm [shape: f32[4,32,128], index: 0, kind: input, shape index: {}]
  %s1 = inlined_call_operand.hbm [shape: f32[2,32,128], index: 1, kind: input, shape index: {}]
  %s2 = inlined_call_operand.vmem [shape: f32[1,128], index: 2, kind: input, shape index: {}]
  %s3 = inlined_call_operand.hbm [shape: f32[1,1,1], index: 3, kind: output, shape index: {0}]
  %s4 = inlined_call_operand.hbm [shape: f32[1,1,128], index: 4, kind: output, shape index: {1}]
  %5 = xla_tuple %s3, %s4
  %s6 = sld [smem:[#allocation0]]
  $region81: #{tpu_custom_call.1} parent=0
    _
  %s8 = ssub.s32 1, %s6
  %s9 = scalar_select 0, %s8, %s6
  $region1: #{tpu_custom_call.1} parent=0
    #allocation5 [shape = 'u8[8192]{0}', space=vmem, size = 0x2000, scoped, tag = 'input window, operand 0']
    #allocation6 [shape = 's32[2]{0}', space=sflag, size = 0x8, scoped, tag = 'scoped memory for tpu_custom_call.1']
    #allocation7 [shape = 's32[2]{0}', space=sflag, size = 0x8, scoped, tag = 'scoped memory for tpu_custom_call.1']
    #allocation8 [shape = 'u8[16384]{0}', space=vmem, size = 0x4000, scoped, tag = 'input window, operand 1']
    #allocation9 [shape = 's32[2]{0}', space=sflag, size = 0x8, scoped, tag = 'scoped memory for tpu_custom_call.1']
    #allocation10 [shape = 'u8[512]{0}', space=vmem, size = 0x400, scoped, tag = 'output window, operand 0, single buffered']
    #allocation11 [shape = 'u8[512]{0}', space=vmem, size = 0x400, scoped, tag = 'output window, operand 1, single buffered']
    #allocation12 [shape = 's32[1]{0}', space=sflag, size = 0x4, scoped, tag = 'scoped memory for tpu_custom_call.1']
    %10 = vsyncpa [#allocation6], 0
    %s11 = scalar_lea.sflag [#allocation6], 1
    %12 = vsyncpa %s11, 0
    %13 = vsyncpa [#allocation9], 0
    %s14 = scalar_lea.sflag [#allocation9], 1
    %15 = vsyncpa %s14, 0
    %16 = vsyncpa [#allocation7], 0
    %17 = vsyncpa [#allocation12], 0
    loop: start=0, step=1, limit=18
    $region2: #{tpu_custom_call.1} parent=1 // loop_pre_header
      _
    $region3: #{tpu_custom_call.1} parent=1 // loop_header
      %s19 = sphi 0, %s23
      %p20 = scmp.ge.s32.totalorder %s19, 18
      %s26 = sphi 0, %s45
      %s27 = sphi 0, %s41
      %s28 = sphi 0, %s37
      %s29 = sphi 0, %s26
      %s30 = sphi 0, %s27
      %s31 = sphi 0, %s28
      %s32 = sphi 0, %s29
      %s33 = sphi 0, %s30
      %s34 = sphi 0, %s31
      %s54 = sphi 0, %s56
      %s57 = sphi 0, %s54
      %s58 = sphi 0, %s57
      %s74 = sphi 0, %s58
      %s84 = sphi 0, %s86
      %s87 = sphi 0, %s84
      %s88 = sphi 0, %s87
      %s104 = sphi 0, %s88
      %s108 = sphi 0, %s108
      %s110 = sphi 0, %s108
      %s111 = sphi 0, %s110
      %s125 = sphi 0, %s111
      %s131 = sphi 0, %s133
      %s134 = sphi 0, %s131
      %s135 = sphi 0, %s134
      %s151 = sphi 0, %s135
      %s157 = sphi 0, %s159
      %s160 = sphi 0, %s157
      %s161 = sphi 0, %s160
      %s177 = sphi 0, %s161
    $region4: #{tpu_custom_call.1} parent=1 // loop_header_branch
      %22 = sbr.rel (%p20) target = $region8
    $region5: #{tpu_custom_call.1} parent=1 // loop_body
      %s24 = ssub.s32 %s19, 1
      %s25 = ssub.s32 %s19, 2
      %s35 = sadd.s32 1, %s28
      %p36 = scmp.ge.s32.totalorder %s35, 4
      %s37 = scalar_select %p36, 0, %s35
      %s38 = sadd.s32 1, %s27
      %s39 = scalar_select %p36, %s38, %s27
      %p40 = scmp.ge.s32.totalorder %s39, 4
      %s41 = scalar_select %p40, 0, %s39
      %s42 = sadd.s32 1, %s26
      %s43 = scalar_select %p40, %s42, %s26
      %p44 = scmp.ge.s32.totalorder %s43, 1
      %s45 = scalar_select %p44, 0, %s43
      %s46 = smul.u32 %s26, 4
      %s47 = sadd.s32 %s46, %s27
      %s48 = smul.u32 %s45, 4
      %s49 = sadd.s32 %s48, %s41
      %s50 = ssub.s32 %s28, %s37
      %s51 = ssub.s32 %s47, %s49
      %s52 = sor.u32 %s50, %s51
      %p53 = scmp.eq.s32.totalorder %s52, 0
      %s55 = sadd.s32 %s54, 1
      %s56 = scalar_select %p53, %s54, %s55
      %p59 = pneg %p53
      %p60 = scmp.eq.s32.totalorder %s19, 15
      %p61 = por %p59, %p60
      %p62 = scmp.ne.s32.totalorder %s54, %s57
      %p63 = scmp.eq.s32.totalorder %s19, 0
      %p64 = por %p62, %p63
      %p65 = scmp.ne.s32.totalorder %s54, %s57
      %p66 = scmp.eq.s32.totalorder %s24, 15
      %p67 = por %p65, %p66
      %p68 = scmp.ne.s32.totalorder %s57, %s58
      %p69 = scmp.eq.s32.totalorder %s24, 0
      %p70 = por %p68, %p69
      %p71 = scmp.ne.s32.totalorder %s57, %s58
      %p72 = scmp.eq.s32.totalorder %s25, 15
      %p73 = por %p71, %p72
      %p75 = scmp.ne.s32.totalorder %s58, %s74
      %p76 = scmp.eq.s32.totalorder %s25, 0
      %p77 = por %p75, %p76
      %s78 = smul.u32 %s26, 4
      %s79 = sadd.s32 %s78, %s27
      %s80 = smul.u32 %s45, 4
      %s81 = sadd.s32 %s80, %s41
      %s82 = ssub.s32 %s79, %s81
      %p83 = scmp.eq.s32.totalorder %s82, 0
      %s85 = sadd.s32 %s84, 1
      %s86 = scalar_select %p83, %s84, %s85
      %p89 = pneg %p83
      %p90 = scmp.eq.s32.totalorder %s19, 15
      %p91 = por %p89, %p90
      %p92 = scmp.ne.s32.totalorder %s84, %s87
      %p93 = scmp.eq.s32.totalorder %s19, 0
      %p94 = por %p92, %p93
      %p95 = scmp.ne.s32.totalorder %s84, %s87
      %p96 = scmp.eq.s32.totalorder %s24, 15
      %p97 = por %p95, %p96
      %p98 = scmp.ne.s32.totalorder %s87, %s88
      %p99 = scmp.eq.s32.totalorder %s24, 0
      %p100 = por %p98, %p99
      %p101 = scmp.ne.s32.totalorder %s87, %s88
      %p102 = scmp.eq.s32.totalorder %s25, 15
      %p103 = por %p101, %p102
      %p105 = scmp.ne.s32.totalorder %s88, %s104
      %p106 = scmp.eq.s32.totalorder %s25, 0
      %p107 = por %p105, %p106
      %s109 = sadd.s32 %s108, 1
      %p112 = scmp.eq.s32.totalorder %s19, 15
      %p113 = scmp.ne.s32.totalorder %s108, %s110
      %p114 = scmp.eq.s32.totalorder %s19, 0
      %p115 = por %p113, %p114
      %p116 = scmp.ne.s32.totalorder %s108, %s110
      %p117 = scmp.eq.s32.totalorder %s24, 15
      %p118 = por %p116, %p117
      %p119 = scmp.ne.s32.totalorder %s110, %s111
      %p120 = scmp.eq.s32.totalorder %s24, 0
      %p121 = por %p119, %p120
      %p122 = scmp.ne.s32.totalorder %s110, %s111
      %p123 = scmp.eq.s32.totalorder %s25, 15
      %p124 = por %p122, %p123
      %p126 = scmp.ne.s32.totalorder %s111, %s125
      %p127 = scmp.eq.s32.totalorder %s25, 0
      %p128 = por %p126, %p127
      %s129 = ssub.s32 %s26, %s45
      %p130 = scmp.eq.s32.totalorder %s129, 0
      %s132 = sadd.s32 %s131, 1
      %s133 = scalar_select %p130, %s131, %s132
      %p136 = pneg %p130
      %p137 = scmp.eq.s32.totalorder %s19, 15
      %p138 = por %p136, %p137
      %p139 = scmp.ne.s32.totalorder %s131, %s134
      %p140 = scmp.eq.s32.totalorder %s19, 0
      %p141 = por %p139, %p140
      %p142 = scmp.ne.s32.totalorder %s131, %s134
      %p143 = scmp.eq.s32.totalorder %s24, 15
      %p144 = por %p142, %p143
      %p145 = scmp.ne.s32.totalorder %s134, %s135
      %p146 = scmp.eq.s32.totalorder %s24, 0
      %p147 = por %p145, %p146
      %p148 = scmp.ne.s32.totalorder %s134, %s135
      %p149 = scmp.eq.s32.totalorder %s25, 15
      %p150 = por %p148, %p149
      %p152 = scmp.ne.s32.totalorder %s135, %s151
      %p153 = scmp.eq.s32.totalorder %s25, 0
      %p154 = por %p152, %p153
      %s155 = ssub.s32 %s26, %s45
      %p156 = scmp.eq.s32.totalorder %s155, 0
      %s158 = sadd.s32 %s157, 1
      %s159 = scalar_select %p156, %s157, %s158
      %p162 = pneg %p156
      %p163 = scmp.eq.s32.totalorder %s19, 15
      %p164 = por %p162, %p163
      %p165 = scmp.ne.s32.totalorder %s157, %s160
      %p166 = scmp.eq.s32.totalorder %s19, 0
      %p167 = por %p165, %p166
      %p168 = scmp.ne.s32.totalorder %s157, %s160
      %p169 = scmp.eq.s32.totalorder %s24, 15
      %p170 = por %p168, %p169
      %p171 = scmp.ne.s32.totalorder %s160, %s161
      %p172 = scmp.eq.s32.totalorder %s24, 0
      %p173 = por %p171, %p172
      %p174 = scmp.ne.s32.totalorder %s160, %s161
      %p175 = scmp.eq.s32.totalorder %s25, 15
      %p176 = por %p174, %p175
      %p178 = scmp.ne.s32.totalorder %s161, %s177
      %p179 = scmp.eq.s32.totalorder %s25, 0
      %p180 = por %p178, %p179
      %p181 = scmp.le.s32.totalorder 1, %s19
      %p182 = scmp.lt.s32.totalorder %s19, 17
      %p183 = pnand %p181, %p182
      %p184 = pneg %p183
      // Predicated region
      $region9: #{tpu_custom_call.1} parent=5 // pred_check
        _
      $region10: #{tpu_custom_call.1} parent=5 // pred_check_branch
        %186 = sbr.rel (%p183) target = $region12
      $region11: #{tpu_custom_call.1} parent=5 // pred_region
        %s187 = ssub.s32 %s19, 1
        // Predicated region
        $region13: #{tpu_custom_call.1} parent=11 // pred_check
          %p188 = pneg %p121
        $region14: #{tpu_custom_call.1} parent=11 // pred_check_branch
          %190 = sbr.rel (%p188) target = $region16
        $region15: #{tpu_custom_call.1} parent=11 // pred_region
          _
        $region16: #{tpu_custom_call.1} parent=11 // pred_fallthru
          _
      $region12: #{tpu_custom_call.1} parent=5 // pred_fallthru
        _
      %p191 = scmp.lt.s32.totalorder %s19, 16
      // Predicated region
      $region17: #{tpu_custom_call.1} parent=5 // pred_check
        %p192 = pneg %p191
      $region18: #{tpu_custom_call.1} parent=5 // pred_check_branch
        %194 = sbr.rel (%p192) target = $region20
      $region19: #{tpu_custom_call.1} parent=5 // pred_region
        // Predicated region
        $region21: #{tpu_custom_call.1} parent=19 // pred_check
          %p195 = pneg %p64
        $region22: #{tpu_custom_call.1} parent=19 // pred_check_branch
          %197 = sbr.rel (%p195) target = $region24
        $region23: #{tpu_custom_call.1} parent=19 // pred_region
          %s198 = sand.u32 %s54, 1
          %s199 = scalar_lea.sflag [#allocation6], %s198
          %s200 = sand.u32 %s54, 1
          %s201 = smul.addr %s200, 8
          %s202 = scalar_lea.vmem [#allocation5], %s201
          %s203 = smul.u32 %s26, 4
          %s204 = sadd.s32 %s203, %s27
          %s206 = ssub.s32 128, 128
          %207 = vsyncadd %s199, %s206
          %s208 = smul.addr %s28, 4
          %s209 = sadd.s32 %s204, %s208
          %s210 = smul.addr %s209, 128
          %s211 = scalar_lea.hbm %s0, %s210
          %s213 = sshll.u32 %s202, 4
          %s214 = int_to_ptr.vmem [resolvable:$true] %s213
          %216 = dma.hbm_to_vmem [thread:$0]  %s211, 128, %s214, %s199
        $region24: #{tpu_custom_call.1} parent=19 // pred_fallthru
          _
        // Predicated region
        $region25: #{tpu_custom_call.1} parent=19 // pred_check
          %p217 = pneg %p94
        $region26: #{tpu_custom_call.1} parent=19 // pred_check_branch
          %219 = sbr.rel (%p217) target = $region28
        $region27: #{tpu_custom_call.1} parent=19 // pred_region
          %s220 = sand.u32 %s84, 1
          %s221 = scalar_lea.sflag [#allocation9], %s220
          %s222 = sand.u32 %s84, 1
          %s223 = smul.addr %s222, 16
          %s224 = scalar_lea.vmem [#allocation8], %s223
          %s225 = smul.u32 %s26, 4
          %s226 = sadd.s32 %s225, %s27
          %s228 = ssub.s32 256, 256
          %229 = vsyncadd %s221, %s228
          %s230 = smul.addr %s226, 128
          %s231 = scalar_lea.hbm %s1, %s230
          %s232 = sshll.u32 %s224, 4
          %s233 = int_to_ptr.vmem [resolvable:$true] %s232
          %238 = dma.hbm_to_vmem [thread:$0]  %s231, 256, %s233, %s221, 512, 128, 8
        $region28: #{tpu_custom_call.1} parent=19 // pred_fallthru
          _
      $region20: #{tpu_custom_call.1} parent=5 // pred_fallthru
        _
      %p239 = scmp.le.s32.totalorder 1, %s19
      %p240 = scmp.lt.s32.totalorder %s19, 17
      %p241 = pnand %p239, %p240
      %p242 = pneg %p241
      // Predicated region
      $region29: #{tpu_custom_call.1} parent=5 // pred_check
        _
      $region30: #{tpu_custom_call.1} parent=5 // pred_check_branch
        %244 = sbr.rel (%p241) target = $region32
      $region31: #{tpu_custom_call.1} parent=5 // pred_region
        %s245 = ssub.s32 %s19, 1
        %s246 = sand.u32 %s57, 1
        %s247 = scalar_lea.sflag [#allocation6], %s246
        %s248 = sand.u32 %s57, 1
        %s249 = smul.addr %s248, 8
        %s250 = scalar_lea.vmem [#allocation5], %s249
        // Predicated region
        $region33: #{tpu_custom_call.1} parent=31 // pred_check
          %p251 = pneg %p70
        $region34: #{tpu_custom_call.1} parent=31 // pred_check_branch
          %253 = sbr.rel (%p251) target = $region36
        $region35: #{tpu_custom_call.1} parent=31 // pred_region
          %254 = dma.done %s247, 128
        $region36: #{tpu_custom_call.1} parent=31 // pred_fallthru
          _
        %s255 = sand.u32 %s87, 1
        %s256 = scalar_lea.sflag [#allocation9], %s255
        %s257 = sand.u32 %s87, 1
        %s258 = smul.addr %s257, 16
        %s259 = scalar_lea.vmem [#allocation8], %s258
        // Predicated region
        $region37: #{tpu_custom_call.1} parent=31 // pred_check
          %p260 = pneg %p100
        $region38: #{tpu_custom_call.1} parent=31 // pred_check_branch
          %262 = sbr.rel (%p260) target = $region40
        $region39: #{tpu_custom_call.1} parent=31 // pred_region
          %263 = dma.done %s256, 256
        $region40: #{tpu_custom_call.1} parent=31 // pred_fallthru
          _
        %s264 = sand.u32 %s57, 1
        %s265 = scalar_lea.sflag [#allocation6], %s264
        %s266 = sand.u32 %s57, 1
        %s267 = smul.addr %s266, 8
        %s268 = scalar_lea.vmem [#allocation5], %s267
        %p269 = pneg %p70
        %p270 = pneg %p67
        %s271 = sand.u32 %s87, 1
        %s272 = scalar_lea.sflag [#allocation9], %s271
        %s273 = sand.u32 %s87, 1
        %s274 = smul.addr %s273, 16
        %s275 = scalar_lea.vmem [#allocation8], %s274
        %p276 = pneg %p100
        %p277 = pneg %p97
        %p278 = pneg %p121
        %p279 = pneg %p118
        %p280 = pneg %p147
        %p281 = pneg %p144
        %p282 = pneg %p173
        %p283 = pneg %p170
        %s284 = smul.u32 %s29, 4
        %s285 = sadd.s32 %s284, %s30
        %s286 = smul.u32 %s29, 4
        %s287 = sadd.s32 %s286, %s30
        %p288 = scmp.eq.s32.totalorder %s30, 0
        %p289 = scmp.eq.s32.totalorder %s31, 0
        %p290 = pnand %p288, %p289
        %p291 = pneg %p290
        // Predicated region
        $region41: #{tpu_custom_call.1} parent=31 // pred_check
          _
        $region42: #{tpu_custom_call.1} parent=31 // pred_check_branch
          %293 = sbr.rel (%p290) target = $region44
        $region43: #{tpu_custom_call.1} parent=31 // pred_region
          %vm294 = vcmask 0
          %295 = vst.msk [vmem:[#allocation10] sm:$0x1] %vm294, 0.0
          %296 = vst [vmem:[#allocation11] sm:$0x1] 0.0
        $region44: #{tpu_custom_call.1} parent=31 // pred_fallthru
          _
        %v297 = vld [vmem:[%s250] sm:$0xff]
        %v298 = vmul.f32 %v297, 10.0
        %299 = vmax.xlane.f32.xlu0 %v298
        %v300 = vpop.xlane.xlu0 %299
        %v301 = vsub.f32 %v298, %v300
        %v302 = vmul.f32 %v301, 1.442695
        %v303 = vpow.pop %v302
        %304 = vadd.xlane.f32.xlu0 %v303
        %v305 = vpop.xlane.xlu0 %304
        %v306 = vlog2.pop %v305
        %v307 = vmul.f32 %v306, 0.6931472
        %v308 = vsub.f32 %v301, %v307
        // Predicated region
        $region45: #{tpu_custom_call.1} parent=31 // pred_check
          %p309 = pneg %p289
        $region46: #{tpu_custom_call.1} parent=31 // pred_check_branch
          %311 = sbr.rel (%p309) target = $region48
        $region47: #{tpu_custom_call.1} parent=31 // pred_region
          %312 = vst [vmem:[#allocation2] sm:$0xff] %v308
          %313 = vst [vmem:[#allocation3] sm:$0xff] %v308
        $region48: #{tpu_custom_call.1} parent=31 // pred_fallthru
          _
        %p314 = scmp.eq.s32.totalorder %s31, 1
        // Predicated region
        $region49: #{tpu_custom_call.1} parent=31 // pred_check
          %p315 = pneg %p314
        $region50: #{tpu_custom_call.1} parent=31 // pred_check_branch
          %317 = sbr.rel (%p315) target = $region52
        $region51: #{tpu_custom_call.1} parent=31 // pred_region
          %318 = vst [vmem:[#allocation4] sm:$0xff] %v308
        $region52: #{tpu_custom_call.1} parent=31 // pred_fallthru
          _
        %p319 = scmp.gt.s32.totalorder %s31, 0
        // Predicated region
        $region53: #{tpu_custom_call.1} parent=31 // pred_check
          %p320 = pneg %p319
        $region54: #{tpu_custom_call.1} parent=31 // pred_check_branch
          %322 = sbr.rel (%p320) target = $region56
        $region55: #{tpu_custom_call.1} parent=31 // pred_region
          %v323 = vld [vmem:[#allocation2] sm:$0xff]
          %v324 = vadd.f32 %v323, %v308
          %325 = vst [vmem:[#allocation2] sm:$0xff] %v324
        $region56: #{tpu_custom_call.1} parent=31 // pred_fallthru
          _
        %p326 = scmp.eq.s32.totalorder %s31, 3
        // Predicated region
        $region57: #{tpu_custom_call.1} parent=31 // pred_check
          %p327 = pneg %p326
        $region58: #{tpu_custom_call.1} parent=31 // pred_check_branch
          %329 = sbr.rel (%p327) target = $region60
        $region59: #{tpu_custom_call.1} parent=31 // pred_region
          %v330 = vld [vmem:[%s259] sm:$0xff]
          %v331 = vld [vmem:[%s259 + $0x8] sm:$0xff]
          %v332 = vld [vmem:[%s2] sm:$0x1]
          %v334 = vlaneseq
          %v335 = vshrl.u32 %v334, 7
          %v336 = vsub.s32 0, %v335
          %v337 = vrot.slane %v332, %v336
          %v339 = vsub.f32 %v330, %v337
          %v340 = vsub.f32 %v331, %v337
          %v341 = vmul.f32 %v339, 14.285714
          %v342 = vmul.f32 %v340, 14.285714
          %343 = vmax.xlane.f32.xlu0 %v341
          %v344 = vpop.xlane.xlu0 %343
          %345 = vmax.xlane.f32.xlu0 %v342
          %v346 = vpop.xlane.xlu0 %345
          %v347 = vsub.f32 %v341, %v344
          %v348 = vsub.f32 %v342, %v346
          %v349 = vmul.f32 %v347, 1.442695
          %v350 = vpow.pop %v349
          %v351 = vmul.f32 %v348, 1.442695
          %v352 = vpow.pop %v351
          %353 = vadd.xlane.f32.xlu0 %v350
          %v354 = vpop.xlane.xlu0 %353
          %355 = vadd.xlane.f32.xlu0 %v352
          %v356 = vpop.xlane.xlu0 %355
          %v357 = vld [vmem:[#allocation2] sm:$0xff]
          %v358 = vld [vmem:[#allocation3] sm:$0xff]
          %v359 = vsub.f32 %v357, %v358
          %v360 = vmul.f32 %v350, %v359
          %361 = vadd.xlane.f32.xlu0 %v360
          %v362 = vpop.xlane.xlu0 %361
          %v363 = vld [vmem:[#allocation4] sm:$0xff]
          %v364 = vsub.f32 %v357, %v363
          %v365 = vmul.f32 %v352, %v364
          %366 = vadd.xlane.f32.xlu0 %v365
          %v367 = vpop.xlane.xlu0 %366
          %v368 = vrcp.pop %v354
          %v369 = vmul.f32 %v362, %v368
          %v370 = vrcp.pop %v356
          %v371 = vmul.f32 %v367, %v370
          %v372 = vadd.f32 %v369, %v371
          %v373 = vld [vmem:[#allocation10] sm:$0x1]
          %vm374 = vcmask 7168
          %v375 = vsel %vm374, %v372, 0.0
          %376 = vadd.xlane.f32.xlu0 %v375
          %v377 = vpop.xlane.xlu0 %376
          %v378 = vrot.slane %v377, 4
          %v379 = vadd.f32 %v377, %v378
          %v380 = vrot.slane %v379, 2
          %v381 = vadd.f32 %v379, %v380
          %v382 = vrot.slane %v381, 1
          %v383 = vadd.f32 %v381, %v382
          %s384 = vtos %v383
          %s385 = ssub.f32 0.0, %s384
          %v386 = vstv %s385
          %v387 = vadd.f32 %v373, %v386
          %vm388 = vcmask 0
          %389 = vst.msk [vmem:[#allocation10] sm:$0x1] %vm388, %v387
          %v390 = vrot.slane %v330, 4
          %v391 = vadd.f32 %v330, %v390
          %v392 = vrot.slane %v391, 2
          %v393 = vadd.f32 %v391, %v392
          %v394 = vrot.slane %v393, 1
          %v395 = vadd.f32 %v393, %v394
          %v396 = vrot.slane %v331, 4
          %v397 = vadd.f32 %v331, %v396
          %v398 = vrot.slane %v397, 2
          %v399 = vadd.f32 %v397, %v398
          %v400 = vrot.slane %v399, 1
          %v401 = vadd.f32 %v399, %v400
          %v402 = vld [vmem:[#allocation11] sm:$0x1]
          %v403 = vadd.f32 %v395, %v401
          %v404 = vadd.f32 %v402, %v403
          %405 = vst [vmem:[#allocation11] sm:$0x1] %v404
        $region60: #{tpu_custom_call.1} parent=31 // pred_fallthru
          _
        // Predicated region
        $region61: #{tpu_custom_call.1} parent=31 // pred_check
          %p406 = pneg %p144
        $region62: #{tpu_custom_call.1} parent=31 // pred_check_branch
          %408 = sbr.rel (%p406) target = $region64
        $region63: #{tpu_custom_call.1} parent=31 // pred_region
          %s410 = ssub.s32 16, 16
          %411 = vsyncadd [#allocation7], %s410
          %s412 = smul.addr %s29, 16
          %s413 = scalar_lea.hbm %s3, %s412
          %s415 = sshll.u32 [#allocation10], 4
          %s416 = int_to_ptr.vmem [resolvable:$true] %s415
          %418 = dma.vmem_to_hbm [thread:$0]  %s416, 16, %s413, [#allocation7]
        $region64: #{tpu_custom_call.1} parent=31 // pred_fallthru
          _
        // Predicated region
        $region65: #{tpu_custom_call.1} parent=31 // pred_check
          %p419 = pneg %p170
        $region66: #{tpu_custom_call.1} parent=31 // pred_check_branch
          %421 = sbr.rel (%p419) target = $region68
        $region67: #{tpu_custom_call.1} parent=31 // pred_region
          %s423 = ssub.s32 16, 16
          %424 = vsyncadd [#allocation12], %s423
          %s425 = smul.addr %s29, 16
          %s426 = scalar_lea.hbm %s4, %s425
          %s428 = sshll.u32 [#allocation11], 4
          %s429 = int_to_ptr.vmem [resolvable:$true] %s428
          %431 = dma.vmem_to_hbm [thread:$0]  %s429, 16, %s426, [#allocation12]
        $region68: #{tpu_custom_call.1} parent=31 // pred_fallthru
          _
        // Predicated region
        $region69: #{tpu_custom_call.1} parent=31 // pred_check
          %p432 = pneg %p144
        $region70: #{tpu_custom_call.1} parent=31 // pred_check_branch
          %434 = sbr.rel (%p432) target = $region72
        $region71: #{tpu_custom_call.1} parent=31 // pred_region
          %435 = dma.done [#allocation7], 16
        $region72: #{tpu_custom_call.1} parent=31 // pred_fallthru
          _
        // Predicated region
        $region73: #{tpu_custom_call.1} parent=31 // pred_check
          %p436 = pneg %p170
        $region74: #{tpu_custom_call.1} parent=31 // pred_check_branch
          %438 = sbr.rel (%p436) target = $region76
        $region75: #{tpu_custom_call.1} parent=31 // pred_region
          %439 = dma.done [#allocation12], 16
        $region76: #{tpu_custom_call.1} parent=31 // pred_fallthru
          _
      $region32: #{tpu_custom_call.1} parent=5 // pred_fallthru
        _
      %p440 = scmp.le.s32.totalorder 2, %s19
      // Predicated region
      $region77: #{tpu_custom_call.1} parent=5 // pred_check
        %p441 = pneg %p440
      $region78: #{tpu_custom_call.1} parent=5 // pred_check_branch
        %443 = sbr.rel (%p441) target = $region80
      $region79: #{tpu_custom_call.1} parent=5 // pred_region
        %s444 = ssub.s32 %s19, 2
      $region80: #{tpu_custom_call.1} parent=5 // pred_fallthru
        _
    $region6: #{tpu_custom_call.1} parent=1 // loop_footer
      %s23 = sadd.s32 1, %s19
    $region7: #{tpu_custom_call.1} parent=1 // loop_footer_branch
      %18 = sbr.rel target = $region3
    $region8: #{tpu_custom_call.1} parent=1 // loop_exit
      _
    %445 = vsyncpa [#allocation6], 1
    %s446 = scalar_lea.sflag [#allocation6], 1
    %447 = vsyncpa %s446, 1
    %448 = vsyncpa [#allocation9], 1
    %s449 = scalar_lea.sflag [#allocation9], 1
    %450 = vsyncpa %s449, 1
    %451 = vsyncpa [#allocation7], 1
    %s452 = scalar_lea.sflag [#allocation7], 1
    %453 = vsyncpa %s452, 1
    %454 = vsyncpa [#allocation12], 1

</llo_original>
